<compile_context>
chip_gen: v6e
topology: v6e:2x2x1
jax: 0.10.0
libtpu: 0.0.40
codegen_flags: <defaults>
</compile_context>

<pallas_src>
import functools
import math

import jax
import jax.numpy as jnp
from jax.experimental import pallas as pl
from jax.experimental.pallas import tpu as pltpu


# Safe on every generation (v5e/v6e: 128 MiB physical, v7x: 64 MiB physical);
# the actual working set at default tile sizes is only a few MiB.
_VMEM_LIMIT_BYTES = 32 * 1024 * 1024
# Target bytes per streamed block (~1 MiB -> ~4 MiB with in+out double buffers).
_TARGET_TILE_BYTES = 1 << 20


def _choose_row_tile(n_rows, max_rows):
    """Largest row tile that divides n_rows exactly and is a multiple of 8
    (or the full extent), so every block tiles the array with no edge blocks."""
    if n_rows <= max_rows:
        return n_rows
    t = (max_rows // 8) * 8
    while t >= 8:
        if n_rows % t == 0:
            return t
        t -= 8
    return n_rows  # fallback: single full block


# ---------------------------------------------------------------------------
# Pass 1: per-batch lane-grouped sums (global average pool, unnormalized).
# ---------------------------------------------------------------------------
def _squeeze_kernel(x_ref, s_ref):
    # x_ref: (1, TILE_R, LANE); s_ref: (1, 1, LANE) fp32 accumulator (resident
    # across the reduction axis r = program_id(1)).
    @pl.when(pl.program_id(1) == 0)
    def _init():
        s_ref[...] = jnp.zeros_like(s_ref)

    s_ref[...] += jnp.sum(x_ref[...].astype(jnp.float32), axis=1, keepdims=True)


# ---------------------------------------------------------------------------
# Pass 2: batched SE-MLP.  Weights are pre-folded so this is exactly
#   gate_lane = sigmoid(relu(sums @ W0' + b0) @ W1' + b1')
# with gate_lane[b, l] == sigmoid-gate for channel (l % C).
# ---------------------------------------------------------------------------
def _gate_kernel(s_ref, w0_ref, b0_ref, w1_ref, b1_ref, g_ref):
    h = jnp.dot(s_ref[...], w0_ref[...], preferred_element_type=jnp.float32)
    h = jnp.maximum(h + b0_ref[...], 0.0)
    logits = jnp.dot(h, w1_ref[...], preferred_element_type=jnp.float32) + b1_ref[...]
    g_ref[...] = jax.nn.sigmoid(logits)


# ---------------------------------------------------------------------------
# Pass 3: lane-dense streaming scale  out = x * gate  (broadcast over rows).
# ---------------------------------------------------------------------------
def _scale_kernel(x_ref, g_ref, o_ref):
    # x_ref/o_ref: (1, TILE_R, LANE); g_ref: (1, 1, LANE)
    o_ref[...] = x_ref[...] * g_ref[...].astype(x_ref.dtype)


def ca_layer(x, conv0_w, conv0_b, conv1_w, conv1_b, *, max_tile_rows=2048):
    """x: (B, D, H, W, C); conv weights in PyTorch (out, in[,1,1,1]) layout."""
    B, D, H, W, C = x.shape
    conv0_w = conv0_w.reshape(conv0_w.shape[0], -1)   # (Cr, C)
    conv1_w = conv1_w.reshape(conv1_w.shape[0], -1)   # (C, Cr)
    Cr = conv0_w.shape[0]
    S = D * H * W
    E = S * C

    # ---- lane-dense layout: (B, N_ROWS, LANE), LANE a multiple of 128 -------
    base_lane = (C * 128) // math.gcd(C, 128)          # lcm(C, 128)
    lane = base_lane if (E % base_lane == 0) else C    # fallback: plain (S, C)
    n_rows = E // lane
    rep = lane // C                                    # spatial positions / row

    itemsize = jnp.dtype(x.dtype).itemsize
    budget_rows = max(8, _TARGET_TILE_BYTES // (lane * itemsize))
    tile_r = _choose_row_tile(n_rows, min(max_tile_rows, budget_rows))
    n_r_tiles = n_rows // tile_r

    x_rows = x.reshape(B, n_rows, lane)

    # ---- fold lane->channel reduction, 1/S and channel->lane tiling into the
    #      two tiny conv matrices (done once in plain XLA on tiny arrays) -----
    f32 = jnp.float32
    sel = jnp.tile(jnp.eye(C, dtype=f32), (rep, 1))                 # (lane, C)
    w0 = conv0_w.T.astype(f32)                                      # (C, Cr)
    w1 = conv1_w.T.astype(f32)                                      # (Cr, C)
    w0p = (sel * (1.0 / float(S))) @ w0                             # (lane, Cr)
    b0p = conv0_b.reshape(1, Cr).astype(f32)                        # (1, Cr)
    w1p = w1 @ sel.T                                                # (Cr, lane)
    b1p = jnp.tile(conv1_b.reshape(1, C).astype(f32), (1, rep))     # (1, lane)

    # ---- pass 1: squeeze (tiled reduction over spatial rows) ----------------
    sums = pl.pallas_call(
        _squeeze_kernel,
        out_shape=jax.ShapeDtypeStruct((B, 1, lane), f32),
        grid_spec=pltpu.PrefetchScalarGridSpec(
            num_scalar_prefetch=0,
            grid=(B, n_r_tiles),
            in_specs=[pl.BlockSpec((1, tile_r, lane), lambda b, r: (b, r, 0))],
            out_specs=pl.BlockSpec((1, 1, lane), lambda b, r: (b, 0, 0)),
        ),
        compiler_params=pltpu.CompilerParams(
            dimension_semantics=("parallel", "arbitrary"),
            vmem_limit_bytes=_VMEM_LIMIT_BYTES,
        ),
    )(x_rows)

    # ---- pass 2: one batched MLP for all batches (no per-step M=1 matmuls) --
    gate = pl.pallas_call(
        _gate_kernel,
        out_shape=jax.ShapeDtypeStruct((B, lane), f32),
        grid_spec=pltpu.PrefetchScalarGridSpec(
            num_scalar_prefetch=0,
            grid=(1,),
            in_specs=[
                pl.BlockSpec((B, lane), lambda i: (0, 0)),
                pl.BlockSpec((lane, Cr), lambda i: (0, 0)),
                pl.BlockSpec((1, Cr), lambda i: (0, 0)),
                pl.BlockSpec((Cr, lane), lambda i: (0, 0)),
                pl.BlockSpec((1, lane), lambda i: (0, 0)),
            ],
            out_specs=pl.BlockSpec((B, lane), lambda i: (0, 0)),
        ),
        compiler_params=pltpu.CompilerParams(
            dimension_semantics=("arbitrary",),
            vmem_limit_bytes=_VMEM_LIMIT_BYTES,
        ),
    )(sums.reshape(B, lane), w0p, b0p, w1p, b1p)

    # ---- pass 3: streaming elementwise scale (both axes parallel) -----------
    out_rows = pl.pallas_call(
        _scale_kernel,
        out_shape=jax.ShapeDtypeStruct((B, n_rows, lane), x.dtype),
        grid_spec=pltpu.PrefetchScalarGridSpec(
            num_scalar_prefetch=0,
            grid=(B, n_r_tiles),
            in_specs=[
                pl.BlockSpec((1, tile_r, lane), lambda b, r: (b, r, 0)),
                pl.BlockSpec((1, 1, lane), lambda b, r: (b, 0, 0)),
            ],
            out_specs=pl.BlockSpec((1, tile_r, lane), lambda b, r: (b, r, 0)),
        ),
        compiler_params=pltpu.CompilerParams(
            dimension_semantics=("parallel", "parallel"),
            vmem_limit_bytes=_VMEM_LIMIT_BYTES,
        ),
    )(x_rows, gate.reshape(B, 1, lane))

    return out_rows.reshape(B, D, H, W, C)


def ca_layer_ref(x, conv0_w, conv0_b, conv1_w, conv1_b):
    """Pure-JAX reference mirroring the PyTorch forward."""
    Cr = conv0_w.shape[0]
    C = conv1_w.shape[0]
    w0 = conv0_w.reshape(Cr, -1)
    w1 = conv1_w.reshape(C, -1)
    mean = jnp.mean(x, axis=(1, 2, 3))                          # (B, C)
    h = jnp.maximum(mean @ w0.T + conv0_b, 0.0)                 # (B, Cr)
    w = jax.nn.sigmoid(h @ w1.T + conv1_b)                      # (B, C)
    return x * w[:, None, None, None, :]


if __name__ == "__main__":
    key = jax.random.PRNGKey(0)
    B, D, H, W, C = 2, 8, 8, 8, 16
    reduction = 4
    Cr = C // reduction

    k_x, k_w0, k_b0, k_w1, k_b1 = jax.random.split(key, 5)
    x = jax.random.normal(k_x, (B, D, H, W, C), dtype=jnp.float32)
    # Conv3d 1x1x1 weights: torch shape (out, in, 1, 1, 1) -> keep (out, in).
    conv0_w = 0.1 * jax.random.normal(k_w0, (Cr, C), dtype=jnp.float32)
    conv0_b = 0.1 * jax.random.normal(k_b0, (Cr,), dtype=jnp.float32)
    conv1_w = 0.1 * jax.random.normal(k_w1, (C, Cr), dtype=jnp.float32)
    conv1_b = 0.1 * jax.random.normal(k_b1, (C,), dtype=jnp.float32)

    # Small max_tile_rows so the demo exercises multi-tile reduction + scale
    # (S*C = 8192 elems -> LANE = 128, N_ROWS = 64, TILE_R = 16, 4 row tiles).
    ca = jax.jit(functools.partial(ca_layer, max_tile_rows=16))
    out = ca(x, conv0_w, conv0_b, conv1_w, conv1_b)
    out = jax.block_until_ready(out)

    ref = ca_layer_ref(x, conv0_w, conv0_b, conv1_w, conv1_b)
    assert out.shape == (B, D, H, W, C)
    # Loose-ish tolerance: TPU f32 matmuls (kernel MXU vs XLA default) may use
    # bf16 passes; a genuinely wrong kernel would be off by O(0.1-1).
    assert jnp.allclose(out, ref, atol=1e-3, rtol=1e-3)

    print("KERNEL_OK")
</pallas_src>

<mosaic_0001>
module attributes {stable_mosaic.version = 11 : i64} {
  func.func @_squeeze_kernel(%arg0: i32, %arg1: i32, %arg2: memref<1x16x128xf32, #tpu.memory_space<vmem>>, %arg3: memref<1x1x128xf32, #tpu.memory_space<vmem>>) attributes {dimension_semantics = [#tpu.dimension_semantics<parallel>, #tpu.dimension_semantics<arbitrary>], iteration_bounds = array<i64: 2, 4>, scalar_prefetch = 0 : i64, scratch_operands = 0 : i64, tpu.core_type = #tpu.core_type<tc>, window_params = [{transform_indices = @transform_0, window_bounds = array<i64: 1, 16, 128>}, {transform_indices = @transform_1, window_bounds = array<i64: 1, 1, 128>}]} {
    %c0_i32 = arith.constant 0 : i32
    %0 = arith.cmpi eq, %arg1, %c0_i32 : i32
    %1 = arith.extui %0 : i1 to i32
    %c0_i32_0 = arith.constant 0 : i32
    %2 = arith.cmpi ne, %1, %c0_i32_0 : i32
    scf.if %2 {
      %cst_9 = arith.constant 0.000000e+00 : f32
      %9 = vector.broadcast %cst_9 : f32 to vector<1x1x128xf32>
      %c0_10 = arith.constant 0 : index
      %c0_11 = arith.constant 0 : index
      %c0_12 = arith.constant 0 : index
      %10 = vector.load %arg3[%c0_10, %c0_11, %c0_12] : memref<1x1x128xf32, #tpu.memory_space<vmem>>, vector<1x1x128xf32>
      tpu.vector_store %arg3[%c0_10, %c0_11, %c0_12], %9 {strides = array<i32>} : memref<1x1x128xf32, #tpu.memory_space<vmem>>, vector<1x1x128xf32>,
    } else {
    }
    %c0 = arith.constant 0 : index
    %c0_1 = arith.constant 0 : index
    %c0_2 = arith.constant 0 : index
    %3 = vector.load %arg3[%c0, %c0_1, %c0_2] : memref<1x1x128xf32, #tpu.memory_space<vmem>>, vector<1x1x128xf32>
    %c0_3 = arith.constant 0 : index
    %c0_4 = arith.constant 0 : index
    %c0_5 = arith.constant 0 : index
    %4 = vector.load %arg2[%c0_3, %c0_4, %c0_5] : memref<1x16x128xf32, #tpu.memory_space<vmem>>, vector<1x16x128xf32>
    %cst = arith.constant dense<0.000000e+00> : vector<1x128xf32>
    %5 = vector.multi_reduction <add>, %4, %cst [1] : vector<1x16x128xf32> to vector<1x128xf32>
    %6 = vector.shape_cast %5 : vector<1x128xf32> to vector<1x1x128xf32>
    %7 = arith.addf %3, %6 : vector<1x1x128xf32>
    %c0_6 = arith.constant 0 : index
    %c0_7 = arith.constant 0 : index
    %c0_8 = arith.constant 0 : index
    %8 = vector.load %arg3[%c0_6, %c0_7, %c0_8] : memref<1x1x128xf32, #tpu.memory_space<vmem>>, vector<1x1x128xf32>
    tpu.vector_store %arg3[%c0_6, %c0_7, %c0_8], %7 {strides = array<i32>} : memref<1x1x128xf32, #tpu.memory_space<vmem>>, vector<1x1x128xf32>,
    return
  }
  func.func @transform_0(%arg0: i32, %arg1: i32) -> (i32, i32, i32) {
    %c0_i32 = arith.constant 0 : i32
    %c0_i32_0 = arith.constant 0 : i32
    return %arg0, %arg1, %c0_i32 : i32, i32, i32
  }
  func.func @transform_1(%arg0: i32, %arg1: i32) -> (i32, i32, i32) {
    %c0_i32 = arith.constant 0 : i32
    %c0_i32_0 = arith.constant 0 : i32
    %c0_i32_1 = arith.constant 0 : i32
    return %arg0, %c0_i32, %c0_i32_0 : i32, i32, i32
  }
}

module attributes {stable_mosaic.version = 11 : i64} {
  func.func @_scale_kernel(%arg0: i32, %arg1: i32, %arg2: memref<1x16x128xf32, #tpu.memory_space<vmem>>, %arg3: memref<1x1x128xf32, #tpu.memory_space<vmem>>, %arg4: memref<1x16x128xf32, #tpu.memory_space<vmem>>) attributes {dimension_semantics = [#tpu.dimension_semantics<parallel>, #tpu.dimension_semantics<parallel>], iteration_bounds = array<i64: 2, 4>, scalar_prefetch = 0 : i64, scratch_operands = 0 : i64, tpu.core_type = #tpu.core_type<tc>, window_params = [{transform_indices = @transform_0, window_bounds = array<i64: 1, 16, 128>}, {transform_indices = @transform_1, window_bounds = array<i64: 1, 1, 128>}, {transform_indices = @transform_2, window_bounds = array<i64: 1, 16, 128>}]} {
    %c0 = arith.constant 0 : index
    %c0_0 = arith.constant 0 : index
    %c0_1 = arith.constant 0 : index
    %0 = vector.load %arg2[%c0, %c0_0, %c0_1] : memref<1x16x128xf32, #tpu.memory_space<vmem>>, vector<1x16x128xf32>
    %c0_2 = arith.constant 0 : index
    %c0_3 = arith.constant 0 : index
    %c0_4 = arith.constant 0 : index
    %1 = vector.load %arg3[%c0_2, %c0_3, %c0_4] : memref<1x1x128xf32, #tpu.memory_space<vmem>>, vector<1x1x128xf32>
    %2 = vector.broadcast %1 : vector<1x1x128xf32> to vector<1x16x128xf32>
    %3 = arith.mulf %0, %2 : vector<1x16x128xf32>
    %c0_5 = arith.constant 0 : index
    %c0_6 = arith.constant 0 : index
    %c0_7 = arith.constant 0 : index
    %4 = vector.load %arg4[%c0_5, %c0_6, %c0_7] : memref<1x16x128xf32, #tpu.memory_space<vmem>>, vector<1x16x128xf32>
    tpu.vector_store %arg4[%c0_5, %c0_6, %c0_7], %3 {strides = array<i32>} : memref<1x16x128xf32, #tpu.memory_space<vmem>>, vector<1x16x128xf32>,
    return
  }
  func.func @transform_0(%arg0: i32, %arg1: i32) -> (i32, i32, i32) {
    %c0_i32 = arith.constant 0 : i32
    %c0_i32_0 = arith.constant 0 : i32
    return %arg0, %arg1, %c0_i32 : i32, i32, i32
  }
  func.func @transform_1(%arg0: i32, %arg1: i32) -> (i32, i32, i32) {
    %c0_i32 = arith.constant 0 : i32
    %c0_i32_0 = arith.constant 0 : i32
    %c0_i32_1 = arith.constant 0 : i32
    return %arg0, %c0_i32, %c0_i32_0 : i32, i32, i32
  }
  func.func @transform_2(%arg0: i32, %arg1: i32) -> (i32, i32, i32) {
    %c0_i32 = arith.constant 0 : i32
    %c0_i32_0 = arith.constant 0 : i32
    return %arg0, %arg1, %c0_i32 : i32, i32, i32
  }
}

module attributes {stable_mosaic.version = 11 : i64} {
  func.func @_gate_kernel(%arg0: i32, %arg1: memref<2x128xf32, #tpu.memory_space<vmem>>, %arg2: memref<128x4xf32, #tpu.memory_space<vmem>>, %arg3: memref<1x4xf32, #tpu.memory_space<vmem>>, %arg4: memref<4x128xf32, #tpu.memory_space<vmem>>, %arg5: memref<1x128xf32, #tpu.memory_space<vmem>>, %arg6: memref<2x128xf32, #tpu.memory_space<vmem>>) attributes {dimension_semantics = [#tpu.dimension_semantics<arbitrary>], iteration_bounds = array<i64: 1>, scalar_prefetch = 0 : i64, scratch_operands = 0 : i64, tpu.core_type = #tpu.core_type<tc>, window_params = [{pipeline_mode = #tpu.pipeline_mode<synchronous>, transform_indices = @transform_0, window_bounds = array<i64: 2, 128>}, {pipeline_mode = #tpu.pipeline_mode<synchronous>, transform_indices = @transform_1, window_bounds = array<i64: 128, 4>}, {pipeline_mode = #tpu.pipeline_mode<synchronous>, transform_indices = @transform_2, window_bounds = array<i64: 1, 4>}, {pipeline_mode = #tpu.pipeline_mode<synchronous>, transform_indices = @transform_3, window_bounds = array<i64: 4, 128>}, {pipeline_mode = #tpu.pipeline_mode<synchronous>, transform_indices = @transform_4, window_bounds = array<i64: 1, 128>}, {pipeline_mode = #tpu.pipeline_mode<synchronous>, transform_indices = @transform_5, window_bounds = array<i64: 2, 128>}]} {
    %c0 = arith.constant 0 : index
    %c0_0 = arith.constant 0 : index
    %0 = vector.load %arg1[%c0, %c0_0] : memref<2x128xf32, #tpu.memory_space<vmem>>, vector<2x128xf32>
    %c0_1 = arith.constant 0 : index
    %c0_2 = arith.constant 0 : index
    %1 = vector.load %arg2[%c0_1, %c0_2] : memref<128x4xf32, #tpu.memory_space<vmem>>, vector<128x4xf32>
    %cst = arith.constant dense<0.000000e+00> : vector<2x4xf32>
    %2 = tpu.matmul %0, %1, %cst {dimension_numbers = #tpu.dot_dimension_numbers<[1], [0], [0], [1], [0, 0, 1, 1], [], []>} : vector<2x128xf32>, vector<128x4xf32>, vector<2x4xf32> -> vector<2x4xf32>
    %c0_3 = arith.constant 0 : index
    %c0_4 = arith.constant 0 : index
    %3 = vector.load %arg3[%c0_3, %c0_4] : memref<1x4xf32, #tpu.memory_space<vmem>>, vector<1x4xf32>
    %4 = vector.broadcast %3 : vector<1x4xf32> to vector<2x4xf32>
    %5 = arith.addf %2, %4 : vector<2x4xf32>
    %cst_5 = arith.constant 0.000000e+00 : f32
    %6 = vector.broadcast %cst_5 : f32 to vector<2x4xf32>
    %7 = arith.maximumf %5, %6 : vector<2x4xf32>
    %c0_6 = arith.constant 0 : index
    %c0_7 = arith.constant 0 : index
    %8 = vector.load %arg4[%c0_6, %c0_7] : memref<4x128xf32, #tpu.memory_space<vmem>>, vector<4x128xf32>
    %cst_8 = arith.constant dense<0.000000e+00> : vector<2x128xf32>
    %9 = tpu.matmul %7, %8, %cst_8 {dimension_numbers = #tpu.dot_dimension_numbers<[1], [0], [0], [1], [0, 0, 1, 1], [], []>} : vector<2x4xf32>, vector<4x128xf32>, vector<2x128xf32> -> vector<2x128xf32>
    %c0_9 = arith.constant 0 : index
    %c0_10 = arith.constant 0 : index
    %10 = vector.load %arg5[%c0_9, %c0_10] : memref<1x128xf32, #tpu.memory_space<vmem>>, vector<1x128xf32>
    %11 = vector.broadcast %10 : vector<1x128xf32> to vector<2x128xf32>
    %12 = arith.addf %9, %11 : vector<2x128xf32>
    %13 = arith.negf %12 : vector<2x128xf32>
    %14 = math.exp %13 : vector<2x128xf32>
    %cst_11 = arith.constant 1.000000e+00 : f32
    %15 = vector.broadcast %cst_11 : f32 to vector<2x128xf32>
    %16 = arith.addf %15, %14 : vector<2x128xf32>
    %17 = arith.divf %15, %16 : vector<2x128xf32>
    %c0_12 = arith.constant 0 : index
    %c0_13 = arith.constant 0 : index
    %18 = vector.load %arg6[%c0_12, %c0_13] : memref<2x128xf32, #tpu.memory_space<vmem>>, vector<2x128xf32>
    tpu.vector_store %arg6[%c0_12, %c0_13], %17 {strides = array<i32>} : memref<2x128xf32, #tpu.memory_space<vmem>>, vector<2x128xf32>,
    return
  }
  func.func @transform_0(%arg0: i32) -> (i32, i32) {
    %c0_i32 = arith.constant 0 : i32
    %c0_i32_0 = arith.constant 0 : i32
    %c0_i32_1 = arith.constant 0 : i32
    return %c0_i32, %c0_i32_0 : i32, i32
  }
  func.func @transform_1(%arg0: i32) -> (i32, i32) {
    %c0_i32 = arith.constant 0 : i32
    %c0_i32_0 = arith.constant 0 : i32
    %c0_i32_1 = arith.constant 0 : i32
    return %c0_i32, %c0_i32_0 : i32, i32
  }
  func.func @transform_2(%arg0: i32) -> (i32, i32) {
    %c0_i32 = arith.constant 0 : i32
    %c0_i32_0 = arith.constant 0 : i32
    %c0_i32_1 = arith.constant 0 : i32
    return %c0_i32, %c0_i32_0 : i32, i32
  }
  func.func @transform_3(%arg0: i32) -> (i32, i32) {
    %c0_i32 = arith.constant 0 : i32
    %c0_i32_0 = arith.constant 0 : i32
    %c0_i32_1 = arith.constant 0 : i32
    return %c0_i32, %c0_i32_0 : i32, i32
  }
  func.func @transform_4(%arg0: i32) -> (i32, i32) {
    %c0_i32 = arith.constant 0 : i32
    %c0_i32_0 = arith.constant 0 : i32
    %c0_i32_1 = arith.constant 0 : i32
    return %c0_i32, %c0_i32_0 : i32, i32
  }
  func.func @transform_5(%arg0: i32) -> (i32, i32) {
    %c0_i32 = arith.constant 0 : i32
    %c0_i32_0 = arith.constant 0 : i32
    %c0_i32_1 = arith.constant 0 : i32
    return %c0_i32, %c0_i32_0 : i32, i32
  }
}

</mosaic_0001>

<llo_original>
// kernel: ca_layer.5
$region0: #{ca_layer.5}
  #allocation0 [shape = 'u32[]', space=smem, size = 0x4, offset = 0x4, fixed_abs, tag = 'smem constant byte address 0x4 - core index']
  #allocation1 [shape = 'u32[144,128]{1,0:T(1,128)}', space=vmem, size = 0x12000, scoped, tag = 'internal scratch']
  %s0 = inlined_call_operand.vmem [shape: f32[2,64,128], index: 0, kind: input, shape index: {}]
  %s1 = inlined_call_operand.vmem [shape: f32[2,1,128], index: 1, kind: input, shape index: {}]
  %s2 = inlined_call_operand.vmem [shape: f32[2,64,128], index: 2, kind: output, shape index: {}]
  %s3 = sld [smem:[#allocation0]]
  $region41: #{ca_layer.5} parent=0
    _
  %s5 = ssub.s32 1, %s3
  %s6 = scalar_select 0, %s5, %s3
  loop: start=0, step=1, limit=10
  $region2: #{ca_layer.5} parent=0 // loop_pre_header
    _
  $region3: #{ca_layer.5} parent=0 // loop_header
    %s8 = sphi 0, %s12
    %p9 = scmp.ge.s32.totalorder %s8, 10
    %s15 = sphi 0, %s27
    %s16 = sphi 0, %s23
    %s17 = sphi 0, %s15
    %s18 = sphi 0, %s16
    %s19 = sphi 0, %s17
    %s20 = sphi 0, %s18
    %s32 = sphi 0, %s34
    %s35 = sphi 0, %s32
    %s36 = sphi 0, %s35
    %s52 = sphi 0, %s36
    %s58 = sphi 0, %s60
    %s61 = sphi 0, %s58
    %s62 = sphi 0, %s61
    %s78 = sphi 0, %s62
    %s86 = sphi 0, %s88
    %s89 = sphi 0, %s86
    %s90 = sphi 0, %s89
    %s106 = sphi 0, %s90
  $region4: #{ca_layer.5} parent=0 // loop_header_branch
    %11 = sbr.rel (%p9) target = $region8
  $region5: #{ca_layer.5} parent=0 // loop_body
    %s13 = ssub.s32 %s8, 1
    %s14 = ssub.s32 %s8, 2
    %s21 = sadd.s32 1, %s16
    %p22 = scmp.ge.s32.totalorder %s21, 4
    %s23 = scalar_select %p22, 0, %s21
    %s24 = sadd.s32 1, %s15
    %s25 = scalar_select %p22, %s24, %s15
    %p26 = scmp.ge.s32.totalorder %s25, 2
    %s27 = scalar_select %p26, 0, %s25
    %s28 = ssub.s32 %s15, %s27
    %s29 = ssub.s32 %s16, %s23
    %s30 = sor.u32 %s28, %s29
    %p31 = scmp.eq.s32.totalorder %s30, 0
    %s33 = sadd.s32 %s32, 1
    %s34 = scalar_select %p31, %s32, %s33
    %p37 = pneg %p31
    %p38 = scmp.eq.s32.totalorder %s8, 7
    %p39 = por %p37, %p38
    %p40 = scmp.ne.s32.totalorder %s32, %s35
    %p41 = scmp.eq.s32.totalorder %s8, 0
    %p42 = por %p40, %p41
    %p43 = scmp.ne.s32.totalorder %s32, %s35
    %p44 = scmp.eq.s32.totalorder %s13, 7
    %p45 = por %p43, %p44
    %p46 = scmp.ne.s32.totalorder %s35, %s36
    %p47 = scmp.eq.s32.totalorder %s13, 0
    %p48 = por %p46, %p47
    %p49 = scmp.ne.s32.totalorder %s35, %s36
    %p50 = scmp.eq.s32.totalorder %s14, 7
    %p51 = por %p49, %p50
    %p53 = scmp.ne.s32.totalorder %s36, %s52
    %p54 = scmp.eq.s32.totalorder %s14, 0
    %p55 = por %p53, %p54
    %s56 = ssub.s32 %s15, %s27
    %p57 = scmp.eq.s32.totalorder %s56, 0
    %s59 = sadd.s32 %s58, 1
    %s60 = scalar_select %p57, %s58, %s59
    %p63 = pneg %p57
    %p64 = scmp.eq.s32.totalorder %s8, 7
    %p65 = por %p63, %p64
    %p66 = scmp.ne.s32.totalorder %s58, %s61
    %p67 = scmp.eq.s32.totalorder %s8, 0
    %p68 = por %p66, %p67
    %p69 = scmp.ne.s32.totalorder %s58, %s61
    %p70 = scmp.eq.s32.totalorder %s13, 7
    %p71 = por %p69, %p70
    %p72 = scmp.ne.s32.totalorder %s61, %s62
    %p73 = scmp.eq.s32.totalorder %s13, 0
    %p74 = por %p72, %p73
    %p75 = scmp.ne.s32.totalorder %s61, %s62
    %p76 = scmp.eq.s32.totalorder %s14, 7
    %p77 = por %p75, %p76
    %p79 = scmp.ne.s32.totalorder %s62, %s78
    %p80 = scmp.eq.s32.totalorder %s14, 0
    %p81 = por %p79, %p80
    %s82 = ssub.s32 %s15, %s27
    %s83 = ssub.s32 %s16, %s23
    %s84 = sor.u32 %s82, %s83
    %p85 = scmp.eq.s32.totalorder %s84, 0
    %s87 = sadd.s32 %s86, 1
    %s88 = scalar_select %p85, %s86, %s87
    %p91 = pneg %p85
    %p92 = scmp.eq.s32.totalorder %s8, 7
    %p93 = por %p91, %p92
    %p94 = scmp.ne.s32.totalorder %s86, %s89
    %p95 = scmp.eq.s32.totalorder %s8, 0
    %p96 = por %p94, %p95
    %p97 = scmp.ne.s32.totalorder %s86, %s89
    %p98 = scmp.eq.s32.totalorder %s13, 7
    %p99 = por %p97, %p98
    %p100 = scmp.ne.s32.totalorder %s89, %s90
    %p101 = scmp.eq.s32.totalorder %s13, 0
    %p102 = por %p100, %p101
    %p103 = scmp.ne.s32.totalorder %s89, %s90
    %p104 = scmp.eq.s32.totalorder %s14, 7
    %p105 = por %p103, %p104
    %p107 = scmp.ne.s32.totalorder %s90, %s106
    %p108 = scmp.eq.s32.totalorder %s14, 0
    %p109 = por %p107, %p108
    %p110 = scmp.le.s32.totalorder 1, %s8
    %p111 = scmp.lt.s32.totalorder %s8, 9
    %p112 = pnand %p110, %p111
    %p113 = pneg %p112
    // Predicated region
    $region9: #{ca_layer.5} parent=5 // pred_check
      _
    $region10: #{ca_layer.5} parent=5 // pred_check_branch
      %115 = sbr.rel (%p112) target = $region12
    $region11: #{ca_layer.5} parent=5 // pred_region
      %s116 = ssub.s32 %s8, 1
    $region12: #{ca_layer.5} parent=5 // pred_fallthru
      _
    %p117 = scmp.lt.s32.totalorder %s8, 8
    // Predicated region
    $region13: #{ca_layer.5} parent=5 // pred_check
      %p118 = pneg %p117
    $region14: #{ca_layer.5} parent=5 // pred_check_branch
      %120 = sbr.rel (%p118) target = $region16
    $region15: #{ca_layer.5} parent=5 // pred_region
      // Predicated region
      $region17: #{ca_layer.5} parent=15 // pred_check
        %p121 = pneg %p42
      $region18: #{ca_layer.5} parent=15 // pred_check_branch
        %123 = sbr.rel (%p121) target = $region20
      $region19: #{ca_layer.5} parent=15 // pred_region
        %s124 = smul.u32 2, %s16
        %p125 = scmp.lt.s32.totalorder %s15, 1
        %s126 = scalar_select %p125, %s15, 1
        %p127 = scmp.lt.s32.totalorder %s124, 7
        %s128 = scalar_select %p127, %s124, 7
        %s129 = smul.addr %s126, 8
        %s130 = sadd.s32 %s128, %s129
        %s131 = smul.addr %s130, 8
        %s132 = scalar_lea.vmem %s0, %s131
        %s133 = smul.u32 2, %s16
      $region20: #{ca_layer.5} parent=15 // pred_fallthru
        _
      // Predicated region
      $region21: #{ca_layer.5} parent=15 // pred_check
        %p134 = pneg %p68
      $region22: #{ca_layer.5} parent=15 // pred_check_branch
        %136 = sbr.rel (%p134) target = $region24
      $region23: #{ca_layer.5} parent=15 // pred_region
        %p137 = scmp.lt.s32.totalorder %s15, 1
        %s138 = scalar_select %p137, %s15, 1
        %s139 = scalar_lea.vmem %s1, %s138
      $region24: #{ca_layer.5} parent=15 // pred_fallthru
        _
    $region16: #{ca_layer.5} parent=5 // pred_fallthru
      _
    %p140 = scmp.le.s32.totalorder 1, %s8
    %p141 = scmp.lt.s32.totalorder %s8, 9
    %p142 = pnand %p140, %p141
    %p143 = pneg %p142
    // Predicated region
    $region25: #{ca_layer.5} parent=5 // pred_check
      _
    $region26: #{ca_layer.5} parent=5 // pred_check_branch
      %145 = sbr.rel (%p142) target = $region28
    $region27: #{ca_layer.5} parent=5 // pred_region
      %s146 = ssub.s32 %s8, 1
      %s147 = smul.u32 2, %s18
      %p148 = scmp.lt.s32.totalorder %s17, 1
      %s149 = scalar_select %p148, %s17, 1
      %p150 = scmp.lt.s32.totalorder %s147, 7
      %s151 = scalar_select %p150, %s147, 7
      %s152 = smul.addr %s149, 8
      %s153 = sadd.s32 %s151, %s152
      %s154 = smul.addr %s153, 8
      %s155 = scalar_lea.vmem %s0, %s154
      %p156 = pneg %p48
      %p157 = pneg %p45
      %p158 = scmp.lt.s32.totalorder %s17, 1
      %s159 = scalar_select %p158, %s17, 1
      %s160 = scalar_lea.vmem %s1, %s159
      %p161 = pneg %p74
      %p162 = pneg %p71
      %p163 = pneg %p102
      %p164 = pneg %p99
      %s165 = smul.u32 2, %s18
      %p166 = scmp.lt.s32.totalorder %s17, 1
      %s167 = scalar_select %p166, %s17, 1
      %p168 = scmp.lt.s32.totalorder %s165, 7
      %s169 = scalar_select %p168, %s165, 7
      %s170 = smul.addr %s167, 8
      %s171 = sadd.s32 %s169, %s170
      %s172 = smul.addr %s171, 8
      %s173 = scalar_lea.vmem %s2, %s172
      %s174 = smul.u32 2, %s18
      %p175 = scmp.lt.s32.totalorder %s17, 1
      %s176 = scalar_select %p175, %s17, 1
      %p177 = scmp.lt.s32.totalorder %s174, 7
      %s178 = scalar_select %p177, %s174, 7
      %s179 = smul.addr %s176, 8
      %s180 = sadd.s32 %s178, %s179
      %s181 = smul.addr %s180, 8
      %s182 = scalar_lea.vmem %s0, %s181
      %s183 = smul.u32 2, %s18
      %p184 = scmp.lt.s32.totalorder %s17, 1
      %s185 = scalar_select %p184, %s17, 1
      %s186 = scalar_lea.vmem %s1, %s185
      %s187 = smul.u32 2, %s18
      %p188 = scmp.lt.s32.totalorder %s17, 1
      %s189 = scalar_select %p188, %s17, 1
      %p190 = scmp.lt.s32.totalorder %s187, 7
      %s191 = scalar_select %p190, %s187, 7
      %s192 = smul.addr %s189, 8
      %s193 = sadd.s32 %s191, %s192
      %s194 = smul.addr %s193, 8
      %s195 = scalar_lea.vmem %s2, %s194
      %s196 = smul.u32 2, %s18
      %v197 = vld [vmem:[%s182] sm:$0xff]
      %v198 = vld [vmem:[%s182 + $0x8] sm:$0xff]
      %v199 = vld [vmem:[%s186] sm:$0x1]
      %v201 = vlaneseq
      %v202 = vshrl.u32 %v201, 7
      %v203 = vsub.s32 0, %v202
      %v204 = vrot.slane %v199, %v203
      %v206 = vmul.f32 %v197, %v204
      %v207 = vmul.f32 %v198, %v204
      %208 = vst [vmem:[%s195] sm:$0xff] %v206
      %209 = vst [vmem:[%s195 + $0x8] sm:$0xff] %v207
      %s210 = smul.u32 2, %s18
      %p211 = scmp.lt.s32.totalorder %s17, 1
      %s212 = scalar_select %p211, %s17, 1
      %p213 = scmp.lt.s32.totalorder %s210, 7
      %s214 = scalar_select %p213, %s210, 7
      %s215 = smul.addr %s212, 8
      %s216 = sadd.s32 %s214, %s215
      %s217 = smul.addr %s216, 8
      %s218 = scalar_lea.vmem %s2, %s217
      // Predicated region
      $region29: #{ca_layer.5} parent=27 // pred_check
        %p219 = pneg %p99
      $region30: #{ca_layer.5} parent=27 // pred_check_branch
        %221 = sbr.rel (%p219) target = $region32
      $region31: #{ca_layer.5} parent=27 // pred_region
        %s222 = smul.u32 2, %s18
      $region32: #{ca_layer.5} parent=27 // pred_fallthru
        _
    $region28: #{ca_layer.5} parent=5 // pred_fallthru
      _
    %p223 = scmp.le.s32.totalorder 2, %s8
    // Predicated region
    $region33: #{ca_layer.5} parent=5 // pred_check
      %p224 = pneg %p223
    $region34: #{ca_layer.5} parent=5 // pred_check_branch
      %226 = sbr.rel (%p224) target = $region36
    $region35: #{ca_layer.5} parent=5 // pred_region
      %s227 = ssub.s32 %s8, 2
      // Predicated region
      $region37: #{ca_layer.5} parent=35 // pred_check
        %p228 = pneg %p105
      $region38: #{ca_layer.5} parent=35 // pred_check_branch
        %230 = sbr.rel (%p228) target = $region40
      $region39: #{ca_layer.5} parent=35 // pred_region
        %s231 = smul.u32 2, %s20
        %p232 = scmp.lt.s32.totalorder %s19, 1
        %s233 = scalar_select %p232, %s19, 1
        %p234 = scmp.lt.s32.totalorder %s231, 7
        %s235 = scalar_select %p234, %s231, 7
        %s236 = smul.addr %s233, 8
        %s237 = sadd.s32 %s235, %s236
        %s238 = smul.addr %s237, 8
        %s239 = scalar_lea.vmem %s2, %s238
      $region40: #{ca_layer.5} parent=35 // pred_fallthru
        _
    $region36: #{ca_layer.5} parent=5 // pred_fallthru
      _
  $region6: #{ca_layer.5} parent=0 // loop_footer
    %s12 = sadd.s32 1, %s8
  $region7: #{ca_layer.5} parent=0 // loop_footer_branch
    %7 = sbr.rel target = $region3
  $region8: #{ca_layer.5} parent=0 // loop_exit
    _

// kernel: ca_layer.3
$region0: #{ca_layer.3}
  #allocation0 [shape = 'u32[]', space=smem, size = 0x4, offset = 0x4, fixed_abs, tag = 'smem constant byte address 0x4 - core index']
  #allocation1 [shape = 'u32[144,128]{1,0:T(1,128)}', space=vmem, size = 0x12000, scoped, tag = 'internal scratch']
  %s0 = inlined_call_operand.vmem [shape: f32[2,64,128], index: 0, kind: input, shape index: {}]
  %s1 = inlined_call_operand.vmem [shape: f32[2,1,128], index: 1, kind: output, shape index: {}]
  %s2 = sld [smem:[#allocation0]]
  $region41: #{ca_layer.3} parent=0
    _
  %s4 = ssub.s32 1, %s2
  %s5 = scalar_select 0, %s4, %s2
  loop: start=0, step=1, limit=10
  $region2: #{ca_layer.3} parent=0 // loop_pre_header
    _
  $region3: #{ca_layer.3} parent=0 // loop_header
    %s7 = sphi 0, %s11
    %p8 = scmp.ge.s32.totalorder %s7, 10
    %s14 = sphi 0, %s26
    %s15 = sphi 0, %s22
    %s16 = sphi 0, %s14
    %s17 = sphi 0, %s15
    %s18 = sphi 0, %s16
    %s19 = sphi 0, %s17
    %s31 = sphi 0, %s33
    %s34 = sphi 0, %s31
    %s35 = sphi 0, %s34
    %s51 = sphi 0, %s35
    %s57 = sphi 0, %s59
    %s60 = sphi 0, %s57
    %s61 = sphi 0, %s60
    %s77 = sphi 0, %s61
  $region4: #{ca_layer.3} parent=0 // loop_header_branch
    %10 = sbr.rel (%p8) target = $region8
  $region5: #{ca_layer.3} parent=0 // loop_body
    %s12 = ssub.s32 %s7, 1
    %s13 = ssub.s32 %s7, 2
    %s20 = sadd.s32 1, %s15
    %p21 = scmp.ge.s32.totalorder %s20, 4
    %s22 = scalar_select %p21, 0, %s20
    %s23 = sadd.s32 1, %s14
    %s24 = scalar_select %p21, %s23, %s14
    %p25 = scmp.ge.s32.totalorder %s24, 2
    %s26 = scalar_select %p25, 0, %s24
    %s27 = ssub.s32 %s14, %s26
    %s28 = ssub.s32 %s15, %s22
    %s29 = sor.u32 %s27, %s28
    %p30 = scmp.eq.s32.totalorder %s29, 0
    %s32 = sadd.s32 %s31, 1
    %s33 = scalar_select %p30, %s31, %s32
    %p36 = pneg %p30
    %p37 = scmp.eq.s32.totalorder %s7, 7
    %p38 = por %p36, %p37
    %p39 = scmp.ne.s32.totalorder %s31, %s34
    %p40 = scmp.eq.s32.totalorder %s7, 0
    %p41 = por %p39, %p40
    %p42 = scmp.ne.s32.totalorder %s31, %s34
    %p43 = scmp.eq.s32.totalorder %s12, 7
    %p44 = por %p42, %p43
    %p45 = scmp.ne.s32.totalorder %s34, %s35
    %p46 = scmp.eq.s32.totalorder %s12, 0
    %p47 = por %p45, %p46
    %p48 = scmp.ne.s32.totalorder %s34, %s35
    %p49 = scmp.eq.s32.totalorder %s13, 7
    %p50 = por %p48, %p49
    %p52 = scmp.ne.s32.totalorder %s35, %s51
    %p53 = scmp.eq.s32.totalorder %s13, 0
    %p54 = por %p52, %p53
    %s55 = ssub.s32 %s14, %s26
    %p56 = scmp.eq.s32.totalorder %s55, 0
    %s58 = sadd.s32 %s57, 1
    %s59 = scalar_select %p56, %s57, %s58
    %p62 = pneg %p56
    %p63 = scmp.eq.s32.totalorder %s7, 7
    %p64 = por %p62, %p63
    %p65 = scmp.ne.s32.totalorder %s57, %s60
    %p66 = scmp.eq.s32.totalorder %s7, 0
    %p67 = por %p65, %p66
    %p68 = scmp.ne.s32.totalorder %s57, %s60
    %p69 = scmp.eq.s32.totalorder %s12, 7
    %p70 = por %p68, %p69
    %p71 = scmp.ne.s32.totalorder %s60, %s61
    %p72 = scmp.eq.s32.totalorder %s12, 0
    %p73 = por %p71, %p72
    %p74 = scmp.ne.s32.totalorder %s60, %s61
    %p75 = scmp.eq.s32.totalorder %s13, 7
    %p76 = por %p74, %p75
    %p78 = scmp.ne.s32.totalorder %s61, %s77
    %p79 = scmp.eq.s32.totalorder %s13, 0
    %p80 = por %p78, %p79
    %p81 = scmp.le.s32.totalorder 1, %s7
    %p82 = scmp.lt.s32.totalorder %s7, 9
    %p83 = pnand %p81, %p82
    %p84 = pneg %p83
    // Predicated region
    $region9: #{ca_layer.3} parent=5 // pred_check
      _
    $region10: #{ca_layer.3} parent=5 // pred_check_branch
      %86 = sbr.rel (%p83) target = $region12
    $region11: #{ca_layer.3} parent=5 // pred_region
      %s87 = ssub.s32 %s7, 1
    $region12: #{ca_layer.3} parent=5 // pred_fallthru
      _
    %p88 = scmp.lt.s32.totalorder %s7, 8
    // Predicated region
    $region13: #{ca_layer.3} parent=5 // pred_check
      %p89 = pneg %p88
    $region14: #{ca_layer.3} parent=5 // pred_check_branch
      %91 = sbr.rel (%p89) target = $region16
    $region15: #{ca_layer.3} parent=5 // pred_region
      // Predicated region
      $region17: #{ca_layer.3} parent=15 // pred_check
        %p92 = pneg %p41
      $region18: #{ca_layer.3} parent=15 // pred_check_branch
        %94 = sbr.rel (%p92) target = $region20
      $region19: #{ca_layer.3} parent=15 // pred_region
        %s95 = smul.u32 2, %s15
        %p96 = scmp.lt.s32.totalorder %s14, 1
        %s97 = scalar_select %p96, %s14, 1
        %p98 = scmp.lt.s32.totalorder %s95, 7
        %s99 = scalar_select %p98, %s95, 7
        %s100 = smul.addr %s97, 8
        %s101 = sadd.s32 %s99, %s100
        %s102 = smul.addr %s101, 8
        %s103 = scalar_lea.vmem %s0, %s102
        %s104 = smul.u32 2, %s15
      $region20: #{ca_layer.3} parent=15 // pred_fallthru
        _
    $region16: #{ca_layer.3} parent=5 // pred_fallthru
      _
    %p105 = scmp.le.s32.totalorder 1, %s7
    %p106 = scmp.lt.s32.totalorder %s7, 9
    %p107 = pnand %p105, %p106
    %p108 = pneg %p107
    // Predicated region
    $region21: #{ca_layer.3} parent=5 // pred_check
      _
    $region22: #{ca_layer.3} parent=5 // pred_check_branch
      %110 = sbr.rel (%p107) target = $region24
    $region23: #{ca_layer.3} parent=5 // pred_region
      %s111 = ssub.s32 %s7, 1
      %s112 = smul.u32 2, %s17
      %p113 = scmp.lt.s32.totalorder %s16, 1
      %s114 = scalar_select %p113, %s16, 1
      %p115 = scmp.lt.s32.totalorder %s112, 7
      %s116 = scalar_select %p115, %s112, 7
      %s117 = smul.addr %s114, 8
      %s118 = sadd.s32 %s116, %s117
      %s119 = smul.addr %s118, 8
      %s120 = scalar_lea.vmem %s0, %s119
      %p121 = pneg %p47
      %p122 = pneg %p44
      %p123 = pneg %p73
      %p124 = pneg %p70
      %p125 = scmp.lt.s32.totalorder %s16, 1
      %s126 = scalar_select %p125, %s16, 1
      %s127 = scalar_lea.vmem %s1, %s126
      %s128 = smul.u32 2, %s17
      %p129 = scmp.lt.s32.totalorder %s16, 1
      %s130 = scalar_select %p129, %s16, 1
      %p131 = scmp.lt.s32.totalorder %s128, 7
      %s132 = scalar_select %p131, %s128, 7
      %s133 = smul.addr %s130, 8
      %s134 = sadd.s32 %s132, %s133
      %s135 = smul.addr %s134, 8
      %s136 = scalar_lea.vmem %s0, %s135
      %s137 = smul.u32 2, %s17
      %p138 = scmp.lt.s32.totalorder %s16, 1
      %s139 = scalar_select %p138, %s16, 1
      %s140 = scalar_lea.vmem %s1, %s139
      %p141 = scmp.eq.s32.totalorder %s17, 0
      // Predicated region
      $region25: #{ca_layer.3} parent=23 // pred_check
        %p142 = pneg %p141
      $region26: #{ca_layer.3} parent=23 // pred_check_branch
        %144 = sbr.rel (%p142) target = $region28
      $region27: #{ca_layer.3} parent=23 // pred_region
        %145 = vst [vmem:[%s140] sm:$0x1] 0.0
      $region28: #{ca_layer.3} parent=23 // pred_fallthru
        _
      %v146 = vld [vmem:[%s140] sm:$0x1]
      %v147 = vld [vmem:[%s136] sm:$0xff]
      %v148 = vld [vmem:[%s136 + $0x8] sm:$0xff]
      %v149 = vadd.f32 %v147, %v148
      %v150 = vrot.slane %v149, 4
      %v151 = vadd.f32 %v149, %v150
      %v152 = vrot.slane %v151, 2
      %v153 = vadd.f32 %v151, %v152
      %v154 = vrot.slane %v153, 1
      %v155 = vadd.f32 %v153, %v154
      %v156 = vadd.f32 %v146, %v155
      %157 = vst [vmem:[%s140] sm:$0x1] %v156
      %p158 = scmp.lt.s32.totalorder %s16, 1
      %s159 = scalar_select %p158, %s16, 1
      %s160 = scalar_lea.vmem %s1, %s159
      // Predicated region
      $region29: #{ca_layer.3} parent=23 // pred_check
        %p161 = pneg %p70
      $region30: #{ca_layer.3} parent=23 // pred_check_branch
        %163 = sbr.rel (%p161) target = $region32
      $region31: #{ca_layer.3} parent=23 // pred_region
        _
      $region32: #{ca_layer.3} parent=23 // pred_fallthru
        _
    $region24: #{ca_layer.3} parent=5 // pred_fallthru
      _
    %p164 = scmp.le.s32.totalorder 2, %s7
    // Predicated region
    $region33: #{ca_layer.3} parent=5 // pred_check
      %p165 = pneg %p164
    $region34: #{ca_layer.3} parent=5 // pred_check_branch
      %167 = sbr.rel (%p165) target = $region36
    $region35: #{ca_layer.3} parent=5 // pred_region
      %s168 = ssub.s32 %s7, 2
      // Predicated region
      $region37: #{ca_layer.3} parent=35 // pred_check
        %p169 = pneg %p76
      $region38: #{ca_layer.3} parent=35 // pred_check_branch
        %171 = sbr.rel (%p169) target = $region40
      $region39: #{ca_layer.3} parent=35 // pred_region
        %p172 = scmp.lt.s32.totalorder %s18, 1
        %s173 = scalar_select %p172, %s18, 1
        %s174 = scalar_lea.vmem %s1, %s173
      $region40: #{ca_layer.3} parent=35 // pred_fallthru
        _
    $region36: #{ca_layer.3} parent=5 // pred_fallthru
      _
  $region6: #{ca_layer.3} parent=0 // loop_footer
    %s11 = sadd.s32 1, %s7
  $region7: #{ca_layer.3} parent=0 // loop_footer_branch
    %6 = sbr.rel target = $region3
  $region8: #{ca_layer.3} parent=0 // loop_exit
    _

// kernel: ca_layer.4
$region0: #{ca_layer.4}
  #allocation0 [shape = 'u32[]', space=smem, size = 0x4, offset = 0x4, fixed_abs, tag = 'smem constant byte address 0x4 - core index']
  #allocation1 [shape = 'u32[144,128]{1,0:T(1,128)}', space=vmem, size = 0x12000, scoped, tag = 'internal scratch']
  %s0 = inlined_call_operand.vmem [shape: f32[2,128], index: 0, kind: input, shape index: {}]
  %s1 = inlined_call_operand.vmem [shape: f32[128,4], index: 1, kind: input, shape index: {}]
  %s2 = inlined_call_operand.vmem [shape: f32[1,4], index: 2, kind: input, shape index: {}]
  %s3 = inlined_call_operand.vmem [shape: f32[4,128], index: 3, kind: input, shape index: {}]
  %s4 = inlined_call_operand.vmem [shape: f32[1,128], index: 4, kind: input, shape index: {}]
  %s5 = inlined_call_operand.vmem [shape: f32[2,128], index: 5, kind: output, shape index: {}]
  %s6 = sld [smem:[#allocation0]]
  $region30: #{ca_layer.4} parent=0
    _
  %s8 = ssub.s32 1, %s6
  %s9 = scalar_select 0, %s8, %s6
  // Predicated region
  $region2: #{ca_layer.4} parent=0 // pred_check
    _
  $region3: #{ca_layer.4} parent=0 // pred_check_branch
    %11 = sbr.rel (0) target = $region5
  $region4: #{ca_layer.4} parent=0 // pred_region
    _
  $region5: #{ca_layer.4} parent=0 // pred_fallthru
    _
  // Predicated region
  $region6: #{ca_layer.4} parent=0 // pred_check
    _
  $region7: #{ca_layer.4} parent=0 // pred_check_branch
    %13 = sbr.rel (0) target = $region9
  $region8: #{ca_layer.4} parent=0 // pred_region
    _
  $region9: #{ca_layer.4} parent=0 // pred_fallthru
    _
  // Predicated region
  $region10: #{ca_layer.4} parent=0 // pred_check
    _
  $region11: #{ca_layer.4} parent=0 // pred_check_branch
    %15 = sbr.rel (0) target = $region13
  $region12: #{ca_layer.4} parent=0 // pred_region
    _
  $region13: #{ca_layer.4} parent=0 // pred_fallthru
    _
  // Predicated region
  $region14: #{ca_layer.4} parent=0 // pred_check
    _
  $region15: #{ca_layer.4} parent=0 // pred_check_branch
    %17 = sbr.rel (0) target = $region17
  $region16: #{ca_layer.4} parent=0 // pred_region
    _
  $region17: #{ca_layer.4} parent=0 // pred_fallthru
    _
  // Predicated region
  $region18: #{ca_layer.4} parent=0 // pred_check
    _
  $region19: #{ca_layer.4} parent=0 // pred_check_branch
    %19 = sbr.rel (0) target = $region21
  $region20: #{ca_layer.4} parent=0 // pred_region
    _
  $region21: #{ca_layer.4} parent=0 // pred_fallthru
    _
  %v20 = vld [vmem:[%s0] sm:$0x3]
  %v21 = vld [vmem:[%s1] sm:$0xff]
  %v22 = vld [vmem:[%s1 + $0x8] sm:$0xff]
  %v23 = vld [vmem:[%s1 + $0x10] sm:$0xff]
  %v24 = vld [vmem:[%s1 + $0x18] sm:$0xff]
  %v25 = vld [vmem:[%s1 + $0x20] sm:$0xff]
  %v26 = vld [vmem:[%s1 + $0x28] sm:$0xff]
  %v27 = vld [vmem:[%s1 + $0x30] sm:$0xff]
  %v28 = vld [vmem:[%s1 + $0x38] sm:$0xff]
  %v29 = vld [vmem:[%s1 + $0x40] sm:$0xff]
  %v30 = vld [vmem:[%s1 + $0x48] sm:$0xff]
  %v31 = vld [vmem:[%s1 + $0x50] sm:$0xff]
  %v32 = vld [vmem:[%s1 + $0x58] sm:$0xff]
  %v33 = vld [vmem:[%s1 + $0x60] sm:$0xff]
  %v34 = vld [vmem:[%s1 + $0x68] sm:$0xff]
  %v35 = vld [vmem:[%s1 + $0x70] sm:$0xff]
  %v36 = vld [vmem:[%s1 + $0x78] sm:$0xff]
  %v37 = vld [vmem:[%s2] sm:$0x1]
  %v39 = vlaneseq
  %v40 = vshrl.u32 %v39, 7
  %v41 = vsub.s32 0, %v40
  %v42 = vrot.slane %v37, %v41
  %44 = vmatprep.subr.mxu0 0.0
  %45 = vmatpush1.msra.mxu0 %v36
  %46 = vmatprep.subr.mxu0 0.0
  %47 = vmatpush1.msra.mxu0 %v35
  %48 = vmatprep.subr.mxu0 0.0
  %49 = vmatpush1.msra.mxu0 %v34
  %50 = vmatprep.subr.mxu0 0.0
  %51 = vmatpush1.msra.mxu0 %v33
  %52 = vmatprep.subr.mxu0 0.0
  %53 = vmatpush1.msra.mxu0 %v32
  %54 = vmatprep.subr.mxu0 0.0
  %55 = vmatpush1.msra.mxu0 %v31
  %56 = vmatprep.subr.mxu0 0.0
  %57 = vmatpush1.msra.mxu0 %v30
  %58 = vmatprep.subr.mxu0 0.0
  %59 = vmatpush1.msra.mxu0 %v29
  %60 = vmatprep.subr.mxu0 0.0
  %61 = vmatpush1.msra.mxu0 %v28
  %62 = vmatprep.subr.mxu0 0.0
  %63 = vmatpush1.msra.mxu0 %v27
  %64 = vmatprep.subr.mxu0 0.0
  %65 = vmatpush1.msra.mxu0 %v26
  %66 = vmatprep.subr.mxu0 0.0
  %67 = vmatpush1.msra.mxu0 %v25
  %68 = vmatprep.subr.mxu0 0.0
  %69 = vmatpush1.msra.mxu0 %v24
  %70 = vmatprep.subr.mxu0 0.0
  %71 = vmatpush1.msra.mxu0 %v23
  %72 = vmatprep.subr.mxu0 0.0
  %73 = vmatpush1.msra.mxu0 %v22
  %74 = vmatprep.subr.mxu0 0.0
  %75 = vmatpush1.msra.mxu0 %v21
  %76 = vmatprep.subr.mxu0 0.0
  %77 = vmatpush2.msra.mxu0 0.0
  %78 = vmatprep.subr.mxu0 0.0
  %79 = vmatpush2.msra.mxu0 0.0
  %80 = vmatprep.subr.mxu0 0.0
  %81 = vmatpush2.msra.mxu0 0.0
  %82 = vmatprep.subr.mxu0 0.0
  %83 = vmatpush2.msra.mxu0 0.0
  %84 = vmatprep.subr.mxu0 0.0
  %85 = vmatpush2.msra.mxu0 0.0
  %86 = vmatprep.subr.mxu0 0.0
  %87 = vmatpush2.msra.mxu0 0.0
  %88 = vmatprep.subr.mxu0 0.0
  %89 = vmatpush2.msra.mxu0 0.0
  %90 = vmatprep.subr.mxu0 0.0
  %91 = vmatpush2.msra.mxu0 0.0
  %92 = vmatprep.subr.mxu0 0.0
  %93 = vmatpush2.msra.mxu0 0.0
  %94 = vmatprep.subr.mxu0 0.0
  %95 = vmatpush2.msra.mxu0 0.0
  %96 = vmatprep.subr.mxu0 0.0
  %97 = vmatpush2.msra.mxu0 0.0
  %98 = vmatprep.subr.mxu0 0.0
  %99 = vmatpush2.msra.mxu0 0.0
  %100 = vmatprep.subr.mxu0 0.0
  %101 = vmatpush2.msra.mxu0 0.0
  %102 = vmatprep.subr.mxu0 0.0
  %103 = vmatpush2.msra.mxu0 0.0
  %104 = vmatprep.subr.mxu0 0.0
  %105 = vmatpush2.msra.mxu0 0.0
  %106 = vmatprep.subr.mxu0 0.0
  %107 = vmatpush2.msra.mxu0 0.0
  %108 = vmatprep.mubr.f32.mxu0 0.0
  %109 = vmatmul.mubr.f32.gmra.mxu0 %v20
  %v110 = vpop.f32.mrf.mxu0
  %v111 = vadd.f32 %v42, %v110
  %v112 = vpop.f32.mrf.mxu0
  %113 = vdwg.mxu0
  %v114 = vmax.f32 %v111, 0.0
  %v115 = vld [vmem:[%s3] sm:$0xf]
  %v116 = vld [vmem:[%s4] sm:$0x1]
  %v118 = vlaneseq
  %v119 = vshrl.u32 %v118, 7
  %v120 = vsub.s32 0, %v119
  %v121 = vrot.slane %v116, %v120
  %vm123 = vcmask 31744
  %v125 = vsel %vm123, %v114, 0
  %vm127 = vcmask 1043456
  %v129 = vsel %vm127, %v115, 0
  %131 = vmatprep.subr.mxu0 0.0
  %132 = vmatpush1.msra.mxu0 0.0
  %133 = vmatprep.subr.mxu0 0.0
  %134 = vmatpush1.msra.mxu0 0.0
  %135 = vmatprep.subr.mxu0 0.0
  %136 = vmatpush1.msra.mxu0 0.0
  %137 = vmatprep.subr.mxu0 0.0
  %138 = vmatpush1.msra.mxu0 0.0
  %139 = vmatprep.subr.mxu0 0.0
  %140 = vmatpush1.msra.mxu0 0.0
  %141 = vmatprep.subr.mxu0 0.0
  %142 = vmatpush1.msra.mxu0 0.0
  %143 = vmatprep.subr.mxu0 0.0
  %144 = vmatpush1.msra.mxu0 0.0
  %145 = vmatprep.subr.mxu0 0.0
  %146 = vmatpush1.msra.mxu0 0.0
  %147 = vmatprep.subr.mxu0 0.0
  %148 = vmatpush1.msra.mxu0 0.0
  %149 = vmatprep.subr.mxu0 0.0
  %150 = vmatpush1.msra.mxu0 0.0
  %151 = vmatprep.subr.mxu0 0.0
  %152 = vmatpush1.msra.mxu0 0.0
  %153 = vmatprep.subr.mxu0 0.0
  %154 = vmatpush1.msra.mxu0 0.0
  %155 = vmatprep.subr.mxu0 0.0
  %156 = vmatpush1.msra.mxu0 0.0
  %157 = vmatprep.subr.mxu0 0.0
  %158 = vmatpush1.msra.mxu0 0.0
  %159 = vmatprep.subr.mxu0 0.0
  %160 = vmatpush1.msra.mxu0 0.0
  %161 = vmatprep.subr.mxu0 0.0
  %162 = vmatpush1.msra.mxu0 %v129
  %163 = vmatprep.subr.mxu0 0.0
  %164 = vmatpush2.msra.mxu0 0.0
  %165 = vmatprep.subr.mxu0 0.0
  %166 = vmatpush2.msra.mxu0 0.0
  %167 = vmatprep.subr.mxu0 0.0
  %168 = vmatpush2.msra.mxu0 0.0
  %169 = vmatprep.subr.mxu0 0.0
  %170 = vmatpush2.msra.mxu0 0.0
  %171 = vmatprep.subr.mxu0 0.0
  %172 = vmatpush2.msra.mxu0 0.0
  %173 = vmatprep.subr.mxu0 0.0
  %174 = vmatpush2.msra.mxu0 0.0
  %175 = vmatprep.subr.mxu0 0.0
  %176 = vmatpush2.msra.mxu0 0.0
  %177 = vmatprep.subr.mxu0 0.0
  %178 = vmatpush2.msra.mxu0 0.0
  %179 = vmatprep.subr.mxu0 0.0
  %180 = vmatpush2.msra.mxu0 0.0
  %181 = vmatprep.subr.mxu0 0.0
  %182 = vmatpush2.msra.mxu0 0.0
  %183 = vmatprep.subr.mxu0 0.0
  %184 = vmatpush2.msra.mxu0 0.0
  %185 = vmatprep.subr.mxu0 0.0
  %186 = vmatpush2.msra.mxu0 0.0
  %187 = vmatprep.subr.mxu0 0.0
  %188 = vmatpush2.msra.mxu0 0.0
  %189 = vmatprep.subr.mxu0 0.0
  %190 = vmatpush2.msra.mxu0 0.0
  %191 = vmatprep.subr.mxu0 0.0
  %192 = vmatpush2.msra.mxu0 0.0
  %193 = vmatprep.subr.mxu0 0.0
  %194 = vmatpush2.msra.mxu0 0.0
  %195 = vmatprep.mubr.f32.mxu0 0.0
  %196 = vmatmul.mubr.f32.gmra.mxu0 %v125
  %v197 = vpop.f32.mrf.mxu0
  %v198 = vadd.f32 %v121, %v197
  %v199 = vpop.f32.mrf.mxu0
  %200 = vdwg.mxu0
  %v201 = vxor.u32 %v198, 2147483648
  %v202 = vmul.f32 %v201, 1.442695
  %v203 = vpow.pop %v202
  %v204 = vadd.f32 %v203, 1.0
  %v205 = vrcp.pop %v204
  %v206 = vmul.f32 1.0, %v205
  %207 = vst [vmem:[%s5] sm:$0x3] %v206
  // Predicated region
  $region22: #{ca_layer.4} parent=0 // pred_check
    _
  $region23: #{ca_layer.4} parent=0 // pred_check_branch
    %209 = sbr.rel (0) target = $region25
  $region24: #{ca_layer.4} parent=0 // pred_region
    _
  $region25: #{ca_layer.4} parent=0 // pred_fallthru
    _
  // Predicated region
  $region26: #{ca_layer.4} parent=0 // pred_check
    _
  $region27: #{ca_layer.4} parent=0 // pred_check_branch
    %211 = sbr.rel (0) target = $region29
  $region28: #{ca_layer.4} parent=0 // pred_region
    _
  $region29: #{ca_layer.4} parent=0 // pred_fallthru
    _

</llo_original>
